<compile_context>
chip_gen: v6e
topology: v6e:2x2x1
jax: 0.10.0
libtpu: 0.0.40
codegen_flags: <defaults>
</compile_context>

<pallas_src>
import functools

import jax
import jax.numpy as jnp
from jax import lax
from jax.experimental import pallas as pl
from jax.experimental.pallas import tpu as pltpu

EPS = 1e-5
NEG_SLOPE = 0.01  # nn.LeakyReLU default
LANE = 128


def _round_up(x, m):
    return (x + m - 1) // m * m


def _leaky_relu(x):
    # Valid for 0 < slope < 1: mul + max (2 VPU ops) instead of cmp+mul+select.
    return jnp.maximum(x, NEG_SLOPE * x)


def actor_kernel(x_ref, w_ref, v_ref, o_ref, *, s_pad, feat, a_pad, batch):
    mxu_dtype = w_ref.dtype
    inv_b = 1.0 / float(batch)  # static

    # Packed weight slab rows (all static, tile-aligned slices):
    #   [0, s_pad)                 : W1 [s_pad, feat]
    #   [s_pad, s_pad+feat)        : W2 [feat,  feat]
    #   [s_pad+feat, s_pad+2*feat) : W3 [feat,  a_pad]
    w1 = w_ref[0:s_pad, 0:feat]
    w2 = w_ref[s_pad:s_pad + feat, 0:feat]
    w3 = w_ref[s_pad + feat:s_pad + 2 * feat, 0:a_pad]

    # Packed per-feature vector slab rows: g1, be1, g2, be2, b3 (+ zero pad).
    g1, be1 = v_ref[0:1, 0:feat], v_ref[1:2, 0:feat]
    g2, be2 = v_ref[2:3, 0:feat], v_ref[3:4, 0:feat]
    b3 = v_ref[4:5, 0:a_pad]

    def mm(a, w):
        # MXU matmul; bf16 (default) or f32 operands, always f32 accumulation.
        return jnp.dot(a.astype(mxu_dtype), w, preferred_element_type=jnp.float32)

    def bn(h, g, be):
        # Two-pass mean/variance (robust when |mean| >> std), normalize folded
        # into a single scale so the per-element cost is mul + add on (B, feat).
        mean = jnp.sum(h, axis=0, keepdims=True) * inv_b
        d = h - mean
        var = jnp.sum(d * d, axis=0, keepdims=True) * inv_b  # biased variance
        scale = g * lax.rsqrt(var + EPS)                      # EUP rsqrt
        return d * scale + be

    x = x_ref[...]  # f32, lane-padded state
    # fc1 (bias cancelled by BN) -> bn1 -> leaky_relu
    h = _leaky_relu(bn(mm(x, w1), g1, be1))
    # fc2 (bias cancelled by BN) -> bn2 -> leaky_relu
    h = _leaky_relu(bn(mm(h, w2), g2, be2))
    # fc3 + bias + tanh (width a_pad, not feat)
    h = mm(h, w3) + b3
    o_ref[...] = jnp.tanh(h).astype(o_ref.dtype)


def pack_params(params, *, use_bf16_mxu=True):
    """One-time parameter packing (call when params are created/updated, NOT
    per forward call). Produces two lane-padded slabs:
      w_slab [s_pad + 2*feat, max(feat, a_pad)]  (bf16 by default)
      v_slab [8, max(feat, a_pad)]               (f32: g1, be1, g2, be2, b3, 0..)
    Zero padding is inert: padded W rows/cols and padded gamma/beta are zero,
    so padded feature columns stay exactly 0 through BN / LeakyReLU / tanh and
    are sliced off outside the kernel.
    """
    S, H = params["w1"].shape
    A = params["w3"].shape[1]
    s_pad = _round_up(max(S, 8), LANE)   # lane dim of x / row dim of W1
    feat = _round_up(max(H, 8), LANE)    # lane-dense hidden width
    a_pad = _round_up(max(A, 8), LANE)   # lane-dense output width (decoupled)
    wcols = max(feat, a_pad)
    w_dtype = jnp.bfloat16 if use_bf16_mxu else jnp.float32

    def pad2(a, rows, cols, dtype=jnp.float32):
        out = jnp.zeros((rows, cols), dtype)
        return out.at[:a.shape[0], :a.shape[1]].set(a.astype(dtype))

    w_slab = jnp.concatenate([
        pad2(params["w1"], s_pad, wcols, w_dtype),
        pad2(params["w2"], feat, wcols, w_dtype),
        pad2(params["w3"], feat, wcols, w_dtype),
    ], axis=0)

    v_slab = jnp.concatenate([
        pad2(params["g1"], 1, wcols),
        pad2(params["be1"], 1, wcols),
        pad2(params["g2"], 1, wcols),
        pad2(params["be2"], 1, wcols),
        pad2(params["b3"], 1, wcols),
        jnp.zeros((3, wcols), jnp.float32),
    ], axis=0)

    return dict(w_slab=w_slab, v_slab=v_slab,
                dims=dict(S=S, H=H, A=A, s_pad=s_pad, feat=feat, a_pad=a_pad))


def actor_forward(state, packed):
    """state: [B, state_size] f32; packed: output of pack_params()."""
    B, S = state.shape
    d = packed["dims"]
    assert S == d["S"], "state width does not match packed params"
    s_pad, feat, a_pad, A = d["s_pad"], d["feat"], d["a_pad"], d["A"]
    w_slab, v_slab = packed["w_slab"], packed["v_slab"]

    # Only per-call prep: zero-pad state lanes (padded W1 rows are zero, so the
    # math is unchanged).
    x_pad = jnp.zeros((B, s_pad), jnp.float32).at[:, :S].set(
        state.astype(jnp.float32))

    kernel = functools.partial(actor_kernel, s_pad=s_pad, feat=feat,
                               a_pad=a_pad, batch=B)

    w_bytes = w_slab.size * w_slab.dtype.itemsize
    flops = 2 * B * (s_pad * feat + feat * feat + feat * a_pad)
    transcendentals = B * a_pad + 2 * feat  # tanh + rsqrt
    bytes_accessed = x_pad.size * 4 + w_bytes + v_slab.size * 4 + B * a_pad * 4

    # Everything (inputs, output, ~3 f32 intermediates) lives in VMEM at once
    # in this grid-less design; size the scoped limit explicitly so v5e's
    # 16 MiB default isn't the ceiling, capped below v7x's 64 MiB physical.
    vmem_need = (x_pad.size * 4 + w_bytes + v_slab.size * 4
                 + B * a_pad * 4 + 3 * B * feat * 4)
    vmem_limit = int(min(max(2 * vmem_need, 32 << 20), 64 << 20))

    vmem = pl.BlockSpec(memory_space=pltpu.MemorySpace.VMEM)
    out_pad = pl.pallas_call(
        kernel,
        out_shape=jax.ShapeDtypeStruct((B, a_pad), jnp.float32),
        in_specs=[vmem, vmem, vmem],
        out_specs=vmem,
        compiler_params=pltpu.CompilerParams(vmem_limit_bytes=vmem_limit),
        cost_estimate=pl.CostEstimate(flops=flops,
                                      transcendentals=transcendentals,
                                      bytes_accessed=bytes_accessed),
    )(x_pad, w_slab, v_slab)

    return out_pad[:, :A]


def init_params(key, state_size, action_size, hidden_size):
    """PyTorch nn.Linear-style init (U(-1/sqrt(fan_in), 1/sqrt(fan_in)));
    weights stored transposed as [in_features, out_features]."""
    ks = jax.random.split(key, 6)

    def linear(kw, kb, fan_in, fan_out):
        bound = 1.0 / jnp.sqrt(fan_in)
        w = jax.random.uniform(kw, (fan_in, fan_out), jnp.float32, -bound, bound)
        b = jax.random.uniform(kb, (1, fan_out), jnp.float32, -bound, bound)
        return w, b

    w1, b1 = linear(ks[0], ks[1], state_size, hidden_size)
    w2, b2 = linear(ks[2], ks[3], hidden_size, hidden_size)
    w3, b3 = linear(ks[4], ks[5], hidden_size, action_size)

    return dict(
        w1=w1, b1=b1,
        g1=jnp.ones((1, hidden_size), jnp.float32),
        be1=jnp.zeros((1, hidden_size), jnp.float32),
        w2=w2, b2=b2,
        g2=jnp.ones((1, hidden_size), jnp.float32),
        be2=jnp.zeros((1, hidden_size), jnp.float32),
        w3=w3, b3=b3,
    )


def actor_ref(state, p):
    """Pure-JAX reference matching the PyTorch module (training-mode BN,
    biases included — they cancel inside BN up to fp rounding)."""
    def bn(x, g, be):
        m = jnp.mean(x, axis=0, keepdims=True)
        v = jnp.mean((x - m) ** 2, axis=0, keepdims=True)
        return (x - m) / jnp.sqrt(v + EPS) * g + be

    def lrelu(x):
        return jnp.where(x >= 0, x, NEG_SLOPE * x)

    h = state @ p["w1"] + p["b1"]
    h = lrelu(bn(h, p["g1"], p["be1"]))
    h = h @ p["w2"] + p["b2"]
    h = lrelu(bn(h, p["g2"], p["be2"]))
    h = h @ p["w3"] + p["b3"]
    return jnp.tanh(h)


if __name__ == "__main__":
    B, STATE, ACTION, HIDDEN = 8, 16, 4, 32

    key = jax.random.PRNGKey(0)
    k_x, k_p = jax.random.split(key)
    state = jax.random.normal(k_x, (B, STATE), jnp.float32)
    params = init_params(k_p, STATE, ACTION, HIDDEN)

    ref = actor_ref(state, params)

    # f32 MXU path — tight tolerance vs the pure-JAX reference.
    packed_f32 = pack_params(params, use_bf16_mxu=False)
    out_f32 = jax.block_until_ready(actor_forward(state, packed_f32))
    assert out_f32.shape == (B, ACTION)
    assert jnp.allclose(out_f32, ref, atol=1e-4, rtol=1e-4), \
        "f32 path mismatch vs JAX reference"

    # bf16 MXU path (default; full-rate MXU on v5e/v6e/v7x) — loose tolerance.
    packed_bf16 = pack_params(params)  # use_bf16_mxu=True
    out_bf16 = jax.block_until_ready(actor_forward(state, packed_bf16))
    assert out_bf16.shape == (B, ACTION)
    assert bool(jnp.all(jnp.isfinite(out_bf16)))
    assert jnp.allclose(out_bf16, ref, atol=5e-2, rtol=5e-2), \
        "bf16 path mismatch vs JAX reference"

    print("KERNEL_OK")
</pallas_src>

<mosaic_0001>
module attributes {stable_mosaic.version = 11 : i64} {
  func.func @actor_kernel(%arg0: memref<8x128xf32, #tpu.memory_space<vmem>>, %arg1: memref<384x128xf32, #tpu.memory_space<vmem>>, %arg2: memref<8x128xf32, #tpu.memory_space<vmem>>, %arg3: memref<8x128xf32, #tpu.memory_space<vmem>>) attributes {dimension_semantics = [], scalar_prefetch = 0 : i64, scratch_operands = 0 : i64, tpu.core_type = #tpu.core_type<tc>} {
    %c0 = arith.constant 0 : index
    %c0_0 = arith.constant 0 : index
    %0 = vector.load %arg1[%c0, %c0_0] : memref<384x128xf32, #tpu.memory_space<vmem>>, vector<128x128xf32>
    %c128 = arith.constant 128 : index
    %c0_1 = arith.constant 0 : index
    %1 = vector.load %arg1[%c128, %c0_1] : memref<384x128xf32, #tpu.memory_space<vmem>>, vector<128x128xf32>
    %c256 = arith.constant 256 : index
    %c0_2 = arith.constant 0 : index
    %2 = vector.load %arg1[%c256, %c0_2] : memref<384x128xf32, #tpu.memory_space<vmem>>, vector<128x128xf32>
    %c0_3 = arith.constant 0 : index
    %c0_4 = arith.constant 0 : index
    %3 = vector.load %arg2[%c0_3, %c0_4] : memref<8x128xf32, #tpu.memory_space<vmem>>, vector<1x128xf32>
    %c1 = arith.constant 1 : index
    %c0_5 = arith.constant 0 : index
    %4 = vector.load %arg2[%c1, %c0_5] : memref<8x128xf32, #tpu.memory_space<vmem>>, vector<1x128xf32>
    %c2 = arith.constant 2 : index
    %c0_6 = arith.constant 0 : index
    %5 = vector.load %arg2[%c2, %c0_6] : memref<8x128xf32, #tpu.memory_space<vmem>>, vector<1x128xf32>
    %c3 = arith.constant 3 : index
    %c0_7 = arith.constant 0 : index
    %6 = vector.load %arg2[%c3, %c0_7] : memref<8x128xf32, #tpu.memory_space<vmem>>, vector<1x128xf32>
    %c4 = arith.constant 4 : index
    %c0_8 = arith.constant 0 : index
    %7 = vector.load %arg2[%c4, %c0_8] : memref<8x128xf32, #tpu.memory_space<vmem>>, vector<1x128xf32>
    %c0_9 = arith.constant 0 : index
    %c0_10 = arith.constant 0 : index
    %8 = vector.load %arg0[%c0_9, %c0_10] : memref<8x128xf32, #tpu.memory_space<vmem>>, vector<8x128xf32>
    %cst = arith.constant dense<0.000000e+00> : vector<8x128xf32>
    %9 = tpu.matmul %8, %0, %cst {dimension_numbers = #tpu.dot_dimension_numbers<[1], [0], [0], [1], [0, 0, 1, 1], [], []>} : vector<8x128xf32>, vector<128x128xf32>, vector<8x128xf32> -> vector<8x128xf32>
    %cst_11 = arith.constant dense<0.000000e+00> : vector<128xf32>
    %10 = vector.multi_reduction <add>, %9, %cst_11 [0] : vector<8x128xf32> to vector<128xf32>
    %11 = vector.shape_cast %10 : vector<128xf32> to vector<1x128xf32>
    %cst_12 = arith.constant 1.250000e-01 : f32
    %12 = vector.broadcast %cst_12 : f32 to vector<1x128xf32>
    %13 = arith.mulf %11, %12 : vector<1x128xf32>
    %14 = vector.broadcast %13 : vector<1x128xf32> to vector<8x128xf32>
    %15 = arith.subf %9, %14 : vector<8x128xf32>
    %16 = arith.mulf %15, %15 : vector<8x128xf32>
    %cst_13 = arith.constant dense<0.000000e+00> : vector<128xf32>
    %17 = vector.multi_reduction <add>, %16, %cst_13 [0] : vector<8x128xf32> to vector<128xf32>
    %18 = vector.shape_cast %17 : vector<128xf32> to vector<1x128xf32>
    %cst_14 = arith.constant 1.250000e-01 : f32
    %19 = vector.broadcast %cst_14 : f32 to vector<1x128xf32>
    %20 = arith.mulf %18, %19 : vector<1x128xf32>
    %cst_15 = arith.constant 9.99999974E-6 : f32
    %21 = vector.broadcast %cst_15 : f32 to vector<1x128xf32>
    %22 = arith.addf %20, %21 : vector<1x128xf32>
    %23 = math.rsqrt %22 : vector<1x128xf32>
    %24 = arith.mulf %3, %23 : vector<1x128xf32>
    %25 = vector.broadcast %24 : vector<1x128xf32> to vector<8x128xf32>
    %26 = arith.mulf %15, %25 : vector<8x128xf32>
    %27 = vector.broadcast %4 : vector<1x128xf32> to vector<8x128xf32>
    %28 = arith.addf %26, %27 : vector<8x128xf32>
    %cst_16 = arith.constant 0.00999999977 : f32
    %29 = vector.broadcast %cst_16 : f32 to vector<8x128xf32>
    %30 = arith.mulf %29, %28 : vector<8x128xf32>
    %31 = arith.maximumf %28, %30 : vector<8x128xf32>
    %cst_17 = arith.constant dense<0.000000e+00> : vector<8x128xf32>
    %32 = tpu.matmul %31, %1, %cst_17 {dimension_numbers = #tpu.dot_dimension_numbers<[1], [0], [0], [1], [0, 0, 1, 1], [], []>} : vector<8x128xf32>, vector<128x128xf32>, vector<8x128xf32> -> vector<8x128xf32>
    %cst_18 = arith.constant dense<0.000000e+00> : vector<128xf32>
    %33 = vector.multi_reduction <add>, %32, %cst_18 [0] : vector<8x128xf32> to vector<128xf32>
    %34 = vector.shape_cast %33 : vector<128xf32> to vector<1x128xf32>
    %cst_19 = arith.constant 1.250000e-01 : f32
    %35 = vector.broadcast %cst_19 : f32 to vector<1x128xf32>
    %36 = arith.mulf %34, %35 : vector<1x128xf32>
    %37 = vector.broadcast %36 : vector<1x128xf32> to vector<8x128xf32>
    %38 = arith.subf %32, %37 : vector<8x128xf32>
    %39 = arith.mulf %38, %38 : vector<8x128xf32>
    %cst_20 = arith.constant dense<0.000000e+00> : vector<128xf32>
    %40 = vector.multi_reduction <add>, %39, %cst_20 [0] : vector<8x128xf32> to vector<128xf32>
    %41 = vector.shape_cast %40 : vector<128xf32> to vector<1x128xf32>
    %cst_21 = arith.constant 1.250000e-01 : f32
    %42 = vector.broadcast %cst_21 : f32 to vector<1x128xf32>
    %43 = arith.mulf %41, %42 : vector<1x128xf32>
    %cst_22 = arith.constant 9.99999974E-6 : f32
    %44 = vector.broadcast %cst_22 : f32 to vector<1x128xf32>
    %45 = arith.addf %43, %44 : vector<1x128xf32>
    %46 = math.rsqrt %45 : vector<1x128xf32>
    %47 = arith.mulf %5, %46 : vector<1x128xf32>
    %48 = vector.broadcast %47 : vector<1x128xf32> to vector<8x128xf32>
    %49 = arith.mulf %38, %48 : vector<8x128xf32>
    %50 = vector.broadcast %6 : vector<1x128xf32> to vector<8x128xf32>
    %51 = arith.addf %49, %50 : vector<8x128xf32>
    %cst_23 = arith.constant 0.00999999977 : f32
    %52 = vector.broadcast %cst_23 : f32 to vector<8x128xf32>
    %53 = arith.mulf %52, %51 : vector<8x128xf32>
    %54 = arith.maximumf %51, %53 : vector<8x128xf32>
    %cst_24 = arith.constant dense<0.000000e+00> : vector<8x128xf32>
    %55 = tpu.matmul %54, %2, %cst_24 {dimension_numbers = #tpu.dot_dimension_numbers<[1], [0], [0], [1], [0, 0, 1, 1], [], []>} : vector<8x128xf32>, vector<128x128xf32>, vector<8x128xf32> -> vector<8x128xf32>
    %56 = vector.broadcast %7 : vector<1x128xf32> to vector<8x128xf32>
    %57 = arith.addf %55, %56 : vector<8x128xf32>
    %58 = math.tanh %57 : vector<8x128xf32>
    %c0_25 = arith.constant 0 : index
    %c0_26 = arith.constant 0 : index
    %59 = vector.load %arg3[%c0_25, %c0_26] : memref<8x128xf32, #tpu.memory_space<vmem>>, vector<8x128xf32>
    tpu.vector_store %arg3[%c0_25, %c0_26], %58 {strides = array<i32>} : memref<8x128xf32, #tpu.memory_space<vmem>>, vector<8x128xf32>,
    return
  }
}

</mosaic_0001>

<llo_original>
// kernel: tpu_custom_call.1
$region0: #{tpu_custom_call.1}
  #allocation0 [shape = 'u32[]', space=smem, size = 0x4, offset = 0x4, fixed_abs, tag = 'smem constant byte address 0x4 - core index']
  #allocation1 [shape = 'u32[144,128]{1,0:T(1,128)}', space=vmem, size = 0x12000, scoped, tag = 'internal scratch']
  %s0 = inlined_call_operand.hbm [shape: f32[8,128], index: 0, kind: input, shape index: {}]
  %s1 = inlined_call_operand.hbm [shape: f32[384,128], index: 1, kind: input, shape index: {}]
  %s2 = inlined_call_operand.hbm [shape: f32[8,128], index: 2, kind: input, shape index: {}]
  %s3 = inlined_call_operand.hbm [shape: f32[8,128], index: 3, kind: output, shape index: {}]
  %s4 = sld [smem:[#allocation0]]
  $region34: #{tpu_custom_call.1} parent=0
    _
  %s6 = ssub.s32 1, %s4
  %s7 = scalar_select 0, %s6, %s4
  $region1: #{tpu_custom_call.1} parent=0
    #allocation2 [shape = 'u8[4096]{0}', space=vmem, size = 0x1000, scoped, tag = 'input window, operand 0, single buffered']
    #allocation3 [shape = 's32[1]{0}', space=sflag, size = 0x4, scoped, tag = 'scoped memory for tpu_custom_call.1']
    #allocation4 [shape = 's32[1]{0}', space=sflag, size = 0x4, scoped, tag = 'scoped memory for tpu_custom_call.1']
    #allocation5 [shape = 'u8[196608]{0}', space=vmem, size = 0x30000, scoped, tag = 'input window, operand 1, single buffered']
    #allocation6 [shape = 's32[1]{0}', space=sflag, size = 0x4, scoped, tag = 'scoped memory for tpu_custom_call.1']
    #allocation7 [shape = 'u8[4096]{0}', space=vmem, size = 0x1000, scoped, tag = 'input window, operand 2, single buffered']
    #allocation8 [shape = 'u8[4096]{0}', space=vmem, size = 0x1000, scoped, tag = 'output window, operand 0, single buffered']
    %8 = vsyncpa [#allocation3], 0
    %9 = vsyncpa [#allocation6], 0
    %10 = vsyncpa [#allocation4], 0
    // Predicated region
    $region2: #{tpu_custom_call.1} parent=1 // pred_check
      _
    $region3: #{tpu_custom_call.1} parent=1 // pred_check_branch
      %12 = sbr.rel (0) target = $region5
    $region4: #{tpu_custom_call.1} parent=1 // pred_region
      %s14 = ssub.s32 128, 128
      %15 = vsyncadd [#allocation3], %s14
      %s17 = sshll.u32 [#allocation2], 4
      %s18 = int_to_ptr.vmem [resolvable:$true] %s17
      %20 = dma.hbm_to_vmem [thread:$0]  %s0, 128, %s18, [#allocation3]
    $region5: #{tpu_custom_call.1} parent=1 // pred_fallthru
      _
    // Predicated region
    $region6: #{tpu_custom_call.1} parent=1 // pred_check
      _
    $region7: #{tpu_custom_call.1} parent=1 // pred_check_branch
      %22 = sbr.rel (0) target = $region9
    $region8: #{tpu_custom_call.1} parent=1 // pred_region
      %s24 = ssub.s32 6144, 6144
      %25 = vsyncadd [#allocation6], %s24
      %s26 = sshll.u32 [#allocation5], 4
      %s27 = int_to_ptr.vmem [resolvable:$true] %s26
      %32 = dma.hbm_to_vmem [thread:$0]  %s1, 6144, %s27, [#allocation6], 128, 128, 8
    $region9: #{tpu_custom_call.1} parent=1 // pred_fallthru
      _
    // Predicated region
    $region10: #{tpu_custom_call.1} parent=1 // pred_check
      _
    $region11: #{tpu_custom_call.1} parent=1 // pred_check_branch
      %34 = sbr.rel (0) target = $region13
    $region12: #{tpu_custom_call.1} parent=1 // pred_region
      %s36 = ssub.s32 128, 128
      %37 = vsyncadd [#allocation6], %s36
      %s39 = sshll.u32 [#allocation7], 4
      %s40 = int_to_ptr.vmem [resolvable:$true] %s39
      %42 = dma.hbm_to_vmem [thread:$0]  %s2, 128, %s40, [#allocation6]
    $region13: #{tpu_custom_call.1} parent=1 // pred_fallthru
      _
    // Predicated region
    $region14: #{tpu_custom_call.1} parent=1 // pred_check
      _
    $region15: #{tpu_custom_call.1} parent=1 // pred_check_branch
      %44 = sbr.rel (0) target = $region17
    $region16: #{tpu_custom_call.1} parent=1 // pred_region
      %45 = dma.done [#allocation3], 128
    $region17: #{tpu_custom_call.1} parent=1 // pred_fallthru
      _
    // Predicated region
    $region18: #{tpu_custom_call.1} parent=1 // pred_check
      _
    $region19: #{tpu_custom_call.1} parent=1 // pred_check_branch
      %47 = sbr.rel (0) target = $region21
    $region20: #{tpu_custom_call.1} parent=1 // pred_region
      %48 = dma.done [#allocation6], 6144
    $region21: #{tpu_custom_call.1} parent=1 // pred_fallthru
      _
    // Predicated region
    $region22: #{tpu_custom_call.1} parent=1 // pred_check
      _
    $region23: #{tpu_custom_call.1} parent=1 // pred_check_branch
      %50 = sbr.rel (0) target = $region25
    $region24: #{tpu_custom_call.1} parent=1 // pred_region
      %51 = dma.done [#allocation6], 128
    $region25: #{tpu_custom_call.1} parent=1 // pred_fallthru
      _
    %v52 = vld [vmem:[#allocation5] sm:$0xff]
    %v53 = vld [vmem:[#allocation5 + $0x8] sm:$0xff]
    %v54 = vld [vmem:[#allocation5 + $0x10] sm:$0xff]
    %v55 = vld [vmem:[#allocation5 + $0x18] sm:$0xff]
    %v56 = vld [vmem:[#allocation5 + $0x20] sm:$0xff]
    %v57 = vld [vmem:[#allocation5 + $0x28] sm:$0xff]
    %v58 = vld [vmem:[#allocation5 + $0x30] sm:$0xff]
    %v59 = vld [vmem:[#allocation5 + $0x38] sm:$0xff]
    %v60 = vld [vmem:[#allocation5 + $0x40] sm:$0xff]
    %v61 = vld [vmem:[#allocation5 + $0x48] sm:$0xff]
    %v62 = vld [vmem:[#allocation5 + $0x50] sm:$0xff]
    %v63 = vld [vmem:[#allocation5 + $0x58] sm:$0xff]
    %v64 = vld [vmem:[#allocation5 + $0x60] sm:$0xff]
    %v65 = vld [vmem:[#allocation5 + $0x68] sm:$0xff]
    %v66 = vld [vmem:[#allocation5 + $0x70] sm:$0xff]
    %v67 = vld [vmem:[#allocation5 + $0x78] sm:$0xff]
    %v68 = vld [vmem:[#allocation5 + $0x80] sm:$0xff]
    %v69 = vld [vmem:[#allocation5 + $0x88] sm:$0xff]
    %v70 = vld [vmem:[#allocation5 + $0x90] sm:$0xff]
    %v71 = vld [vmem:[#allocation5 + $0x98] sm:$0xff]
    %v72 = vld [vmem:[#allocation5 + $0xa0] sm:$0xff]
    %v73 = vld [vmem:[#allocation5 + $0xa8] sm:$0xff]
    %v74 = vld [vmem:[#allocation5 + $0xb0] sm:$0xff]
    %v75 = vld [vmem:[#allocation5 + $0xb8] sm:$0xff]
    %v76 = vld [vmem:[#allocation5 + $0xc0] sm:$0xff]
    %v77 = vld [vmem:[#allocation5 + $0xc8] sm:$0xff]
    %v78 = vld [vmem:[#allocation5 + $0xd0] sm:$0xff]
    %v79 = vld [vmem:[#allocation5 + $0xd8] sm:$0xff]
    %v80 = vld [vmem:[#allocation5 + $0xe0] sm:$0xff]
    %v81 = vld [vmem:[#allocation5 + $0xe8] sm:$0xff]
    %v82 = vld [vmem:[#allocation5 + $0xf0] sm:$0xff]
    %v83 = vld [vmem:[#allocation5 + $0xf8] sm:$0xff]
    %v84 = vld [vmem:[#allocation5 + $0x100] sm:$0xff]
    %v85 = vld [vmem:[#allocation5 + $0x108] sm:$0xff]
    %v86 = vld [vmem:[#allocation5 + $0x110] sm:$0xff]
    %v87 = vld [vmem:[#allocation5 + $0x118] sm:$0xff]
    %v88 = vld [vmem:[#allocation5 + $0x120] sm:$0xff]
    %v89 = vld [vmem:[#allocation5 + $0x128] sm:$0xff]
    %v90 = vld [vmem:[#allocation5 + $0x130] sm:$0xff]
    %v91 = vld [vmem:[#allocation5 + $0x138] sm:$0xff]
    %v92 = vld [vmem:[#allocation5 + $0x140] sm:$0xff]
    %v93 = vld [vmem:[#allocation5 + $0x148] sm:$0xff]
    %v94 = vld [vmem:[#allocation5 + $0x150] sm:$0xff]
    %v95 = vld [vmem:[#allocation5 + $0x158] sm:$0xff]
    %v96 = vld [vmem:[#allocation5 + $0x160] sm:$0xff]
    %v97 = vld [vmem:[#allocation5 + $0x168] sm:$0xff]
    %v98 = vld [vmem:[#allocation5 + $0x170] sm:$0xff]
    %v99 = vld [vmem:[#allocation5 + $0x178] sm:$0xff]
    %v100 = vld [vmem:[#allocation7] sm:$0x1]
    %v101 = vld [vmem:[#allocation7 + $0x1] sm:$0x1]
    %v102 = vld [vmem:[#allocation7 + $0x2] sm:$0x1]
    %v103 = vld [vmem:[#allocation7 + $0x3] sm:$0x1]
    %v104 = vld [vmem:[#allocation7 + $0x4] sm:$0x1]
    %v105 = vld [vmem:[#allocation2] sm:$0xff]
    %106 = vmatprep.subr.mxu0 0.0
    %107 = vmatpush1.msra.mxu0 %v67
    %108 = vmatprep.subr.mxu0 0.0
    %109 = vmatpush1.msra.mxu0 %v66
    %110 = vmatprep.subr.mxu0 0.0
    %111 = vmatpush1.msra.mxu0 %v65
    %112 = vmatprep.subr.mxu0 0.0
    %113 = vmatpush1.msra.mxu0 %v64
    %114 = vmatprep.subr.mxu0 0.0
    %115 = vmatpush1.msra.mxu0 %v63
    %116 = vmatprep.subr.mxu0 0.0
    %117 = vmatpush1.msra.mxu0 %v62
    %118 = vmatprep.subr.mxu0 0.0
    %119 = vmatpush1.msra.mxu0 %v61
    %120 = vmatprep.subr.mxu0 0.0
    %121 = vmatpush1.msra.mxu0 %v60
    %122 = vmatprep.subr.mxu0 0.0
    %123 = vmatpush1.msra.mxu0 %v59
    %124 = vmatprep.subr.mxu0 0.0
    %125 = vmatpush1.msra.mxu0 %v58
    %126 = vmatprep.subr.mxu0 0.0
    %127 = vmatpush1.msra.mxu0 %v57
    %128 = vmatprep.subr.mxu0 0.0
    %129 = vmatpush1.msra.mxu0 %v56
    %130 = vmatprep.subr.mxu0 0.0
    %131 = vmatpush1.msra.mxu0 %v55
    %132 = vmatprep.subr.mxu0 0.0
    %133 = vmatpush1.msra.mxu0 %v54
    %134 = vmatprep.subr.mxu0 0.0
    %135 = vmatpush1.msra.mxu0 %v53
    %136 = vmatprep.subr.mxu0 0.0
    %137 = vmatpush1.msra.mxu0 %v52
    %138 = vmatprep.subr.mxu0 0.0
    %139 = vmatpush2.msra.mxu0 0.0
    %140 = vmatprep.subr.mxu0 0.0
    %141 = vmatpush2.msra.mxu0 0.0
    %142 = vmatprep.subr.mxu0 0.0
    %143 = vmatpush2.msra.mxu0 0.0
    %144 = vmatprep.subr.mxu0 0.0
    %145 = vmatpush2.msra.mxu0 0.0
    %146 = vmatprep.subr.mxu0 0.0
    %147 = vmatpush2.msra.mxu0 0.0
    %148 = vmatprep.subr.mxu0 0.0
    %149 = vmatpush2.msra.mxu0 0.0
    %150 = vmatprep.subr.mxu0 0.0
    %151 = vmatpush2.msra.mxu0 0.0
    %152 = vmatprep.subr.mxu0 0.0
    %153 = vmatpush2.msra.mxu0 0.0
    %154 = vmatprep.subr.mxu0 0.0
    %155 = vmatpush2.msra.mxu0 0.0
    %156 = vmatprep.subr.mxu0 0.0
    %157 = vmatpush2.msra.mxu0 0.0
    %158 = vmatprep.subr.mxu0 0.0
    %159 = vmatpush2.msra.mxu0 0.0
    %160 = vmatprep.subr.mxu0 0.0
    %161 = vmatpush2.msra.mxu0 0.0
    %162 = vmatprep.subr.mxu0 0.0
    %163 = vmatpush2.msra.mxu0 0.0
    %164 = vmatprep.subr.mxu0 0.0
    %165 = vmatpush2.msra.mxu0 0.0
    %166 = vmatprep.subr.mxu0 0.0
    %167 = vmatpush2.msra.mxu0 0.0
    %168 = vmatprep.subr.mxu0 0.0
    %169 = vmatpush2.msra.mxu0 0.0
    %170 = vmatprep.mubr.f32.mxu0 0.0
    %171 = vmatmul.mubr.f32.gmra.mxu0 %v105
    %v172 = vpop.f32.mrf.mxu0
    %v173 = vadd.f32 0.0, %v172
    %v174 = vpop.f32.mrf.mxu0
    %175 = vdwg.mxu0
    %v176 = vrot.slane %v173, 4
    %v177 = vadd.f32 %v173, %v176
    %v178 = vrot.slane %v177, 2
    %v179 = vadd.f32 %v177, %v178
    %v180 = vrot.slane %v179, 1
    %v181 = vadd.f32 %v179, %v180
    %v182 = vmul.f32 %v181, 0.125
    %v183 = vsub.f32 %v173, %v182
    %v184 = vmul.f32 %v183, %v183
    %v185 = vrot.slane %v184, 4
    %v186 = vadd.f32 %v184, %v185
    %v187 = vrot.slane %v186, 2
    %v188 = vadd.f32 %v186, %v187
    %v189 = vrot.slane %v188, 1
    %v190 = vadd.f32 %v188, %v189
    %v191 = vmul.f32 %v190, 0.125
    %v192 = vadd.f32 %v191, 1e-05
    %v193 = vrsqrt.pop %v192
    %v194 = vmul.f32 %v100, %v193
    %v195 = vlaneseq
    %v196 = vshrl.u32 %v195, 7
    %v197 = vsub.s32 0, %v196
    %v198 = vrot.slane %v194, %v197
    %v199 = vmul.f32 %v183, %v198
    %v200 = vlaneseq
    %v201 = vshrl.u32 %v200, 7
    %v202 = vsub.s32 0, %v201
    %v203 = vrot.slane %v101, %v202
    %v204 = vadd.f32 %v199, %v203
    %v205 = vmul.f32 %v204, 0.01
    %v206 = vmax.f32 %v204, %v205
    %207 = vmatprep.subr.mxu0 0.0
    %208 = vmatpush1.msra.mxu0 %v83
    %209 = vmatprep.subr.mxu0 0.0
    %210 = vmatpush1.msra.mxu0 %v82
    %211 = vmatprep.subr.mxu0 0.0
    %212 = vmatpush1.msra.mxu0 %v81
    %213 = vmatprep.subr.mxu0 0.0
    %214 = vmatpush1.msra.mxu0 %v80
    %215 = vmatprep.subr.mxu0 0.0
    %216 = vmatpush1.msra.mxu0 %v79
    %217 = vmatprep.subr.mxu0 0.0
    %218 = vmatpush1.msra.mxu0 %v78
    %219 = vmatprep.subr.mxu0 0.0
    %220 = vmatpush1.msra.mxu0 %v77
    %221 = vmatprep.subr.mxu0 0.0
    %222 = vmatpush1.msra.mxu0 %v76
    %223 = vmatprep.subr.mxu0 0.0
    %224 = vmatpush1.msra.mxu0 %v75
    %225 = vmatprep.subr.mxu0 0.0
    %226 = vmatpush1.msra.mxu0 %v74
    %227 = vmatprep.subr.mxu0 0.0
    %228 = vmatpush1.msra.mxu0 %v73
    %229 = vmatprep.subr.mxu0 0.0
    %230 = vmatpush1.msra.mxu0 %v72
    %231 = vmatprep.subr.mxu0 0.0
    %232 = vmatpush1.msra.mxu0 %v71
    %233 = vmatprep.subr.mxu0 0.0
    %234 = vmatpush1.msra.mxu0 %v70
    %235 = vmatprep.subr.mxu0 0.0
    %236 = vmatpush1.msra.mxu0 %v69
    %237 = vmatprep.subr.mxu0 0.0
    %238 = vmatpush1.msra.mxu0 %v68
    %239 = vmatprep.subr.mxu0 0.0
    %240 = vmatpush2.msra.mxu0 0.0
    %241 = vmatprep.subr.mxu0 0.0
    %242 = vmatpush2.msra.mxu0 0.0
    %243 = vmatprep.subr.mxu0 0.0
    %244 = vmatpush2.msra.mxu0 0.0
    %245 = vmatprep.subr.mxu0 0.0
    %246 = vmatpush2.msra.mxu0 0.0
    %247 = vmatprep.subr.mxu0 0.0
    %248 = vmatpush2.msra.mxu0 0.0
    %249 = vmatprep.subr.mxu0 0.0
    %250 = vmatpush2.msra.mxu0 0.0
    %251 = vmatprep.subr.mxu0 0.0
    %252 = vmatpush2.msra.mxu0 0.0
    %253 = vmatprep.subr.mxu0 0.0
    %254 = vmatpush2.msra.mxu0 0.0
    %255 = vmatprep.subr.mxu0 0.0
    %256 = vmatpush2.msra.mxu0 0.0
    %257 = vmatprep.subr.mxu0 0.0
    %258 = vmatpush2.msra.mxu0 0.0
    %259 = vmatprep.subr.mxu0 0.0
    %260 = vmatpush2.msra.mxu0 0.0
    %261 = vmatprep.subr.mxu0 0.0
    %262 = vmatpush2.msra.mxu0 0.0
    %263 = vmatprep.subr.mxu0 0.0
    %264 = vmatpush2.msra.mxu0 0.0
    %265 = vmatprep.subr.mxu0 0.0
    %266 = vmatpush2.msra.mxu0 0.0
    %267 = vmatprep.subr.mxu0 0.0
    %268 = vmatpush2.msra.mxu0 0.0
    %269 = vmatprep.subr.mxu0 0.0
    %270 = vmatpush2.msra.mxu0 0.0
    %271 = vmatprep.mubr.f32.mxu0 0.0
    %272 = vmatmul.mubr.f32.gmra.mxu0 %v206
    %v273 = vpop.f32.mrf.mxu0
    %v274 = vadd.f32 0.0, %v273
    %v275 = vpop.f32.mrf.mxu0
    %276 = vdwg.mxu0
    %v277 = vrot.slane %v274, 4
    %v278 = vadd.f32 %v274, %v277
    %v279 = vrot.slane %v278, 2
    %v280 = vadd.f32 %v278, %v279
    %v281 = vrot.slane %v280, 1
    %v282 = vadd.f32 %v280, %v281
    %v283 = vmul.f32 %v282, 0.125
    %v284 = vsub.f32 %v274, %v283
    %v285 = vmul.f32 %v284, %v284
    %v286 = vrot.slane %v285, 4
    %v287 = vadd.f32 %v285, %v286
    %v288 = vrot.slane %v287, 2
    %v289 = vadd.f32 %v287, %v288
    %v290 = vrot.slane %v289, 1
    %v291 = vadd.f32 %v289, %v290
    %v292 = vmul.f32 %v291, 0.125
    %v293 = vadd.f32 %v292, 1e-05
    %v294 = vrsqrt.pop %v293
    %v295 = vmul.f32 %v102, %v294
    %v296 = vlaneseq
    %v297 = vshrl.u32 %v296, 7
    %v298 = vsub.s32 0, %v297
    %v299 = vrot.slane %v295, %v298
    %v300 = vmul.f32 %v284, %v299
    %v301 = vlaneseq
    %v302 = vshrl.u32 %v301, 7
    %v303 = vsub.s32 0, %v302
    %v304 = vrot.slane %v103, %v303
    %v305 = vadd.f32 %v300, %v304
    %v306 = vmul.f32 %v305, 0.01
    %v307 = vmax.f32 %v305, %v306
    %v308 = vlaneseq
    %v309 = vshrl.u32 %v308, 7
    %v310 = vsub.s32 0, %v309
    %v311 = vrot.slane %v104, %v310
    %312 = vmatprep.subr.mxu0 0.0
    %313 = vmatpush1.msra.mxu0 %v99
    %314 = vmatprep.subr.mxu0 0.0
    %315 = vmatpush1.msra.mxu0 %v98
    %316 = vmatprep.subr.mxu0 0.0
    %317 = vmatpush1.msra.mxu0 %v97
    %318 = vmatprep.subr.mxu0 0.0
    %319 = vmatpush1.msra.mxu0 %v96
    %320 = vmatprep.subr.mxu0 0.0
    %321 = vmatpush1.msra.mxu0 %v95
    %322 = vmatprep.subr.mxu0 0.0
    %323 = vmatpush1.msra.mxu0 %v94
    %324 = vmatprep.subr.mxu0 0.0
    %325 = vmatpush1.msra.mxu0 %v93
    %326 = vmatprep.subr.mxu0 0.0
    %327 = vmatpush1.msra.mxu0 %v92
    %328 = vmatprep.subr.mxu0 0.0
    %329 = vmatpush1.msra.mxu0 %v91
    %330 = vmatprep.subr.mxu0 0.0
    %331 = vmatpush1.msra.mxu0 %v90
    %332 = vmatprep.subr.mxu0 0.0
    %333 = vmatpush1.msra.mxu0 %v89
    %334 = vmatprep.subr.mxu0 0.0
    %335 = vmatpush1.msra.mxu0 %v88
    %336 = vmatprep.subr.mxu0 0.0
    %337 = vmatpush1.msra.mxu0 %v87
    %338 = vmatprep.subr.mxu0 0.0
    %339 = vmatpush1.msra.mxu0 %v86
    %340 = vmatprep.subr.mxu0 0.0
    %341 = vmatpush1.msra.mxu0 %v85
    %342 = vmatprep.subr.mxu0 0.0
    %343 = vmatpush1.msra.mxu0 %v84
    %344 = vmatprep.subr.mxu0 0.0
    %345 = vmatpush2.msra.mxu0 0.0
    %346 = vmatprep.subr.mxu0 0.0
    %347 = vmatpush2.msra.mxu0 0.0
    %348 = vmatprep.subr.mxu0 0.0
    %349 = vmatpush2.msra.mxu0 0.0
    %350 = vmatprep.subr.mxu0 0.0
    %351 = vmatpush2.msra.mxu0 0.0
    %352 = vmatprep.subr.mxu0 0.0
    %353 = vmatpush2.msra.mxu0 0.0
    %354 = vmatprep.subr.mxu0 0.0
    %355 = vmatpush2.msra.mxu0 0.0
    %356 = vmatprep.subr.mxu0 0.0
    %357 = vmatpush2.msra.mxu0 0.0
    %358 = vmatprep.subr.mxu0 0.0
    %359 = vmatpush2.msra.mxu0 0.0
    %360 = vmatprep.subr.mxu0 0.0
    %361 = vmatpush2.msra.mxu0 0.0
    %362 = vmatprep.subr.mxu0 0.0
    %363 = vmatpush2.msra.mxu0 0.0
    %364 = vmatprep.subr.mxu0 0.0
    %365 = vmatpush2.msra.mxu0 0.0
    %366 = vmatprep.subr.mxu0 0.0
    %367 = vmatpush2.msra.mxu0 0.0
    %368 = vmatprep.subr.mxu0 0.0
    %369 = vmatpush2.msra.mxu0 0.0
    %370 = vmatprep.subr.mxu0 0.0
    %371 = vmatpush2.msra.mxu0 0.0
    %372 = vmatprep.subr.mxu0 0.0
    %373 = vmatpush2.msra.mxu0 0.0
    %374 = vmatprep.subr.mxu0 0.0
    %375 = vmatpush2.msra.mxu0 0.0
    %376 = vmatprep.mubr.f32.mxu0 0.0
    %377 = vmatmul.mubr.f32.gmra.mxu0 %v307
    %v378 = vpop.f32.mrf.mxu0
    %v379 = vadd.f32 %v311, %v378
    %v380 = vpop.f32.mrf.mxu0
    %381 = vdwg.mxu0
    %v382 = vtanh.pop %v379
    %383 = vst [vmem:[#allocation8] sm:$0xff] %v382
    // Predicated region
    $region26: #{tpu_custom_call.1} parent=1 // pred_check
      _
    $region27: #{tpu_custom_call.1} parent=1 // pred_check_branch
      %385 = sbr.rel (0) target = $region29
    $region28: #{tpu_custom_call.1} parent=1 // pred_region
      %s387 = ssub.s32 128, 128
      %388 = vsyncadd [#allocation4], %s387
      %s390 = sshll.u32 [#allocation8], 4
      %s391 = int_to_ptr.vmem [resolvable:$true] %s390
      %393 = dma.vmem_to_hbm [thread:$0]  %s391, 128, %s3, [#allocation4]
    $region29: #{tpu_custom_call.1} parent=1 // pred_fallthru
      _
    // Predicated region
    $region30: #{tpu_custom_call.1} parent=1 // pred_check
      _
    $region31: #{tpu_custom_call.1} parent=1 // pred_check_branch
      %395 = sbr.rel (0) target = $region33
    $region32: #{tpu_custom_call.1} parent=1 // pred_region
      %396 = dma.done [#allocation4], 128
    $region33: #{tpu_custom_call.1} parent=1 // pred_fallthru
      _
    %397 = vsyncpa [#allocation3], 1
    %398 = vsyncpa [#allocation6], 1
    %399 = vsyncpa [#allocation4], 1

</llo_original>
